<compile_context>
chip_gen: v5e
topology: v5e:2x2
jax: 0.10.0
libtpu: 0.0.40
codegen_flags: <defaults>
</compile_context>

<pallas_src>
import functools

import jax
import jax.numpy as jnp
from jax.experimental import pallas as pl
from jax.experimental.pallas import tpu as pltpu

IN_F = 40
OUT_F = 30
OUT_PAD = 128  # W/bias padded to one full lane width for a clean VMEM matmul


def nestmlp_kernel(x_ref, w_ref, b_ref, o_ref):
    # x_ref: (TB, 40)  w_ref: (40, 128)  b_ref: (1, 128)  o_ref: (TB, 30)
    y = jnp.dot(x_ref[...], w_ref[...], preferred_element_type=jnp.float32)
    y = y + b_ref[...]                       # broadcast bias over batch rows
    # Store only the real 30 output columns (lane-masked store, hidden by DMA).
    o_ref[...] = jnp.maximum(y[:, :OUT_F], 0.0).astype(o_ref.dtype)


def prepare_params(weight, bias):
    """One-time parameter prep (do this at init, not per forward call).

    weight: (OUT_F, IN_F) PyTorch layout -> (IN_F, OUT_PAD), zero-padded cols.
    bias:   (OUT_F,)                      -> (1, OUT_PAD),   zero-padded.
    The padded columns never reach HBM: the kernel slices to OUT_F on store.
    """
    w_p = jnp.zeros((IN_F, OUT_PAD), weight.dtype).at[:, :OUT_F].set(weight.T)
    b_p = jnp.zeros((1, OUT_PAD), bias.dtype).at[:, :OUT_F].set(bias)
    return w_p, b_p


def _round_up(x, m):
    return ((x + m - 1) // m) * m


@functools.partial(jax.jit, static_argnames=("block_b",))
def nestmlp_forward(x, w_p, b_p, *, block_b=8192):
    """x: (B, 40) f32; w_p: (40, 128) pre-transposed/padded; b_p: (1, 128)."""
    B, in_f = x.shape

    # Row tile: big (amortize per-step overhead), multiple of 8 (sublane),
    # but capped at ceil(B/2) so the grid keeps >= 2 steps when B is large
    # enough -- lets dimension_semantics=("parallel",) use both v7x TCs.
    tb = max(8, min(block_b, _round_up(pl.cdiv(B, 2), 8)))
    if B <= 8:
        tb = B  # single full-extent block (block dim == full array dim)
    grid = (pl.cdiv(B, tb),)  # ragged last block handled by Pallas (no jnp.pad)

    return pl.pallas_call(
        nestmlp_kernel,
        out_shape=jax.ShapeDtypeStruct((B, OUT_F), x.dtype),
        grid=grid,
        in_specs=[
            pl.BlockSpec((tb, in_f), lambda i: (i, 0)),        # x: tiled over batch
            pl.BlockSpec((IN_F, OUT_PAD), lambda i: (0, 0)),   # W: VMEM-resident
            pl.BlockSpec((1, OUT_PAD), lambda i: (0, 0)),      # b: VMEM-resident
        ],
        out_specs=pl.BlockSpec((tb, OUT_F), lambda i: (i, 0)),  # true-width output
        compiler_params=pltpu.CompilerParams(
            # batch tiles are independent -> shard across TCs on v7x megacore
            dimension_semantics=("parallel",),
        ),
        cost_estimate=pl.CostEstimate(
            flops=2 * B * in_f * OUT_F,
            bytes_accessed=4 * (B * in_f + IN_F * OUT_PAD + OUT_PAD + B * OUT_F),
            transcendentals=0,
        ),
    )(x, w_p, b_p)
    # TODO(synk): if a downstream fused kernel wants a lane-dense (128-wide)
    # activation, emit the padded form there instead of re-padding here.


def nestmlp_reference(x, weight, bias):
    return jnp.maximum(x @ weight.T + bias, 0.0)


if __name__ == "__main__":
    key = jax.random.PRNGKey(0)
    k_x, k_w, k_b, k_x2 = jax.random.split(key, 4)

    # Deterministic params mimicking nn.Linear's uniform(-1/sqrt(IN), 1/sqrt(IN))
    bound = 1.0 / (IN_F ** 0.5)
    weight = jax.random.uniform(k_w, (OUT_F, IN_F), jnp.float32, -bound, bound)
    bias = jax.random.uniform(k_b, (OUT_F,), jnp.float32, -bound, bound)
    w_p, b_p = prepare_params(weight, bias)   # hoisted, one-time prep

    # Small-batch check (single grid step, full-extent block).
    B = 8
    x = jax.random.normal(k_x, (B, IN_F), jnp.float32)
    out = jax.block_until_ready(nestmlp_forward(x, w_p, b_p))
    ref = nestmlp_reference(x, weight, bias)
    assert out.shape == (B, OUT_F), out.shape
    assert jnp.allclose(out, ref, atol=1e-5, rtol=1e-5), "mismatch vs reference (B=8)"

    # Exercise the batch grid + ragged last block (B=20, tb=8 -> 3 grid steps,
    # last block partially out of bounds -- no wrapper pad/slice anymore).
    B2 = 20
    x2 = jax.random.normal(k_x2, (B2, IN_F), jnp.float32)
    out2 = jax.block_until_ready(nestmlp_forward(x2, w_p, b_p, block_b=8))
    ref2 = nestmlp_reference(x2, weight, bias)
    assert out2.shape == (B2, OUT_F), out2.shape
    assert jnp.allclose(out2, ref2, atol=1e-5, rtol=1e-5), "mismatch vs reference (B=20)"

    print("KERNEL_OK")
</pallas_src>

<mosaic_0001>
module attributes {stable_mosaic.version = 11 : i64} {
  func.func @nestmlp_kernel(%arg0: i32, %arg1: memref<8x40xf32, #tpu.memory_space<vmem>>, %arg2: memref<40x128xf32, #tpu.memory_space<vmem>>, %arg3: memref<1x128xf32, #tpu.memory_space<vmem>>, %arg4: memref<8x30xf32, #tpu.memory_space<vmem>>) attributes {dimension_semantics = [#tpu.dimension_semantics<parallel>], iteration_bounds = array<i64: 1>, scalar_prefetch = 0 : i64, scratch_operands = 0 : i64, tpu.core_type = #tpu.core_type<tc>, window_params = [{transform_indices = @transform_0, window_bounds = array<i64: 8, 40>}, {pipeline_mode = #tpu.pipeline_mode<synchronous>, transform_indices = @transform_1, window_bounds = array<i64: 40, 128>}, {pipeline_mode = #tpu.pipeline_mode<synchronous>, transform_indices = @transform_2, window_bounds = array<i64: 1, 128>}, {transform_indices = @transform_3, window_bounds = array<i64: 8, 30>}]} {
    %c0 = arith.constant 0 : index
    %c0_0 = arith.constant 0 : index
    %0 = vector.load %arg1[%c0, %c0_0] : memref<8x40xf32, #tpu.memory_space<vmem>>, vector<8x40xf32>
    %c0_1 = arith.constant 0 : index
    %c0_2 = arith.constant 0 : index
    %1 = vector.load %arg2[%c0_1, %c0_2] : memref<40x128xf32, #tpu.memory_space<vmem>>, vector<40x128xf32>
    %cst = arith.constant dense<0.000000e+00> : vector<8x128xf32>
    %2 = tpu.matmul %0, %1, %cst {dimension_numbers = #tpu.dot_dimension_numbers<[1], [0], [0], [1], [0, 0, 1, 1], [], []>} : vector<8x40xf32>, vector<40x128xf32>, vector<8x128xf32> -> vector<8x128xf32>
    %c0_3 = arith.constant 0 : index
    %c0_4 = arith.constant 0 : index
    %3 = vector.load %arg3[%c0_3, %c0_4] : memref<1x128xf32, #tpu.memory_space<vmem>>, vector<1x128xf32>
    %4 = vector.broadcast %3 : vector<1x128xf32> to vector<8x128xf32>
    %5 = arith.addf %2, %4 : vector<8x128xf32>
    %6 = vector.extract_strided_slice %5 {offsets = [0, 0], sizes = [8, 30], strides = [1, 1]} : vector<8x128xf32> to vector<8x30xf32>
    %cst_5 = arith.constant 0.000000e+00 : f32
    %7 = vector.broadcast %cst_5 : f32 to vector<8x30xf32>
    %8 = arith.maximumf %6, %7 : vector<8x30xf32>
    %c0_6 = arith.constant 0 : index
    %c0_7 = arith.constant 0 : index
    %9 = vector.load %arg4[%c0_6, %c0_7] : memref<8x30xf32, #tpu.memory_space<vmem>>, vector<8x30xf32>
    tpu.vector_store %arg4[%c0_6, %c0_7], %8 {strides = array<i32>} : memref<8x30xf32, #tpu.memory_space<vmem>>, vector<8x30xf32>,
    return
  }
  func.func @transform_0(%arg0: i32) -> (i32, i32) {
    %c0_i32 = arith.constant 0 : i32
    %c0_i32_0 = arith.constant 0 : i32
    return %arg0, %c0_i32 : i32, i32
  }
  func.func @transform_1(%arg0: i32) -> (i32, i32) {
    %c0_i32 = arith.constant 0 : i32
    %c0_i32_0 = arith.constant 0 : i32
    %c0_i32_1 = arith.constant 0 : i32
    return %c0_i32, %c0_i32_0 : i32, i32
  }
  func.func @transform_2(%arg0: i32) -> (i32, i32) {
    %c0_i32 = arith.constant 0 : i32
    %c0_i32_0 = arith.constant 0 : i32
    %c0_i32_1 = arith.constant 0 : i32
    return %c0_i32, %c0_i32_0 : i32, i32
  }
  func.func @transform_3(%arg0: i32) -> (i32, i32) {
    %c0_i32 = arith.constant 0 : i32
    %c0_i32_0 = arith.constant 0 : i32
    return %arg0, %c0_i32 : i32, i32
  }
}

</mosaic_0001>

<llo_original>
// kernel: nestmlp_forward.1
$region0: #{nestmlp_forward.1}
  #allocation0 [shape = 'u32[]', space=smem, size = 0x4, offset = 0x4, fixed_abs, tag = 'smem constant byte address 0x4 - core index']
  #allocation1 [shape = 'u32[72,128]{1,0:T(1,128)}', space=vmem, size = 0x9000, scoped, tag = 'internal scratch']
  %s0 = inlined_call_operand.hbm [shape: f32[8,40], index: 0, kind: input, shape index: {}]
  %s1 = inlined_call_operand.hbm [shape: f32[40,128], index: 1, kind: input, shape index: {}]
  %s2 = inlined_call_operand.vmem [shape: f32[1,128], index: 2, kind: input, shape index: {}]
  %s3 = inlined_call_operand.hbm [shape: f32[8,30], index: 3, kind: output, shape index: {}]
  %s4 = sld [smem:[#allocation0]]
  $region30: #{nestmlp_forward.1} parent=0
    _
  %s6 = ssub.s32 1, %s4
  %s7 = scalar_select 0, %s6, %s4
  $region1: #{nestmlp_forward.1} parent=0
    #allocation2 [shape = 'u8[4096]{0}', space=vmem, size = 0x1000, scoped, tag = 'input window, operand 0, single buffered']
    #allocation3 [shape = 's32[1]{0}', space=sflag, size = 0x4, scoped, tag = 'scoped memory for nestmlp_forward.1']
    #allocation4 [shape = 's32[1]{0}', space=sflag, size = 0x4, scoped, tag = 'scoped memory for nestmlp_forward.1']
    #allocation5 [shape = 'u8[20480]{0}', space=vmem, size = 0x5000, scoped, tag = 'input window, operand 1, single buffered']
    #allocation6 [shape = 's32[1]{0}', space=sflag, size = 0x4, scoped, tag = 'scoped memory for nestmlp_forward.1']
    #allocation7 [shape = 'u8[4096]{0}', space=vmem, size = 0x1000, scoped, tag = 'output window, operand 0, single buffered']
    %8 = vsyncpa [#allocation3], 0
    %9 = vsyncpa [#allocation6], 0
    %10 = vsyncpa [#allocation4], 0
    // Predicated region
    $region2: #{nestmlp_forward.1} parent=1 // pred_check
      _
    $region3: #{nestmlp_forward.1} parent=1 // pred_check_branch
      %12 = sbr.rel (0) target = $region5
    $region4: #{nestmlp_forward.1} parent=1 // pred_region
      %14 = vsyncadd [#allocation3], 0
      %s16 = sshll.u32 %s0, 4
      %s17 = int_to_ptr.hbm [resolvable:$true] %s16
      %s18 = sshll.u32 [#allocation2], 4
      %s19 = int_to_ptr.vmem [resolvable:$true] %s18
      %21 = dma.hbm_to_vmem [thread:$0]  %s17, 128, %s19, [#allocation3]
    $region5: #{nestmlp_forward.1} parent=1 // pred_fallthru
      _
    // Predicated region
    $region6: #{nestmlp_forward.1} parent=1 // pred_check
      _
    $region7: #{nestmlp_forward.1} parent=1 // pred_check_branch
      %23 = sbr.rel (0) target = $region9
    $region8: #{nestmlp_forward.1} parent=1 // pred_region
      %25 = vsyncadd [#allocation6], 0
      %s26 = sshll.u32 %s1, 4
      %s27 = int_to_ptr.hbm [resolvable:$true] %s26
      %s28 = sshll.u32 [#allocation5], 4
      %s29 = int_to_ptr.vmem [resolvable:$true] %s28
      %34 = dma.hbm_to_vmem [thread:$0]  %s27, 640, %s29, [#allocation6], 128, 128, 8
    $region9: #{nestmlp_forward.1} parent=1 // pred_fallthru
      _
    // Predicated region
    $region10: #{nestmlp_forward.1} parent=1 // pred_check
      _
    $region11: #{nestmlp_forward.1} parent=1 // pred_check_branch
      %36 = sbr.rel (0) target = $region13
    $region12: #{nestmlp_forward.1} parent=1 // pred_region
      _
    $region13: #{nestmlp_forward.1} parent=1 // pred_fallthru
      _
    // Predicated region
    $region14: #{nestmlp_forward.1} parent=1 // pred_check
      _
    $region15: #{nestmlp_forward.1} parent=1 // pred_check_branch
      %38 = sbr.rel (0) target = $region17
    $region16: #{nestmlp_forward.1} parent=1 // pred_region
      %40 = dma.done [#allocation3], 128
    $region17: #{nestmlp_forward.1} parent=1 // pred_fallthru
      _
    // Predicated region
    $region18: #{nestmlp_forward.1} parent=1 // pred_check
      _
    $region19: #{nestmlp_forward.1} parent=1 // pred_check_branch
      %42 = sbr.rel (0) target = $region21
    $region20: #{nestmlp_forward.1} parent=1 // pred_region
      %44 = dma.done [#allocation6], 640
    $region21: #{nestmlp_forward.1} parent=1 // pred_fallthru
      _
    %v45 = vld [vmem:[#allocation2] sm:$0xff]
    %v46 = vld [vmem:[#allocation5] sm:$0xff]
    %v47 = vld [vmem:[#allocation5 + $0x8] sm:$0xff]
    %v48 = vld [vmem:[#allocation5 + $0x10] sm:$0xff]
    %v49 = vld [vmem:[#allocation5 + $0x18] sm:$0xff]
    %v50 = vld [vmem:[#allocation5 + $0x20] sm:$0xff]
    %v51 = vld [vmem:[%s2] sm:$0x1]
    %v53 = vperm.slane %v51, 0
    %vm55 = vcmask 326656
    %v57 = vsel %vm55, %v45, 0
    %59 = vmatpush.msra.mxu0 0.0
    %60 = vmatpush.msra.mxu0 0.0
    %61 = vmatpush.msra.mxu0 0.0
    %62 = vmatpush.msra.mxu0 0.0
    %63 = vmatpush.msra.mxu0 0.0
    %64 = vmatpush.msra.mxu0 0.0
    %65 = vmatpush.msra.mxu0 0.0
    %66 = vmatpush.msra.mxu0 0.0
    %67 = vmatpush.msra.mxu0 0.0
    %68 = vmatpush.msra.mxu0 0.0
    %69 = vmatpush.msra.mxu0 0.0
    %70 = vmatpush.msra.mxu0 %v50
    %71 = vmatpush.msra.mxu0 %v49
    %72 = vmatpush.msra.mxu0 %v48
    %73 = vmatpush.msra.mxu0 %v47
    %74 = vmatpush.msra.mxu0 %v46
    %75 = vmatmul.f32.gmra.mxu0 %v57
    %v76 = vpop.f32.mrf.mxu0
    %v77 = vadd.f32 %v53, %v76
    %78 = vdwg.mxu0
    %v79 = vmax.f32 %v77, 0.0
    %vm80 = vcmask 244736
    %81 = vst.msk [vmem:[#allocation7] sm:$0xff] %vm80, %v79
    // Predicated region
    $region22: #{nestmlp_forward.1} parent=1 // pred_check
      _
    $region23: #{nestmlp_forward.1} parent=1 // pred_check_branch
      %83 = sbr.rel (0) target = $region25
    $region24: #{nestmlp_forward.1} parent=1 // pred_region
      %85 = vsyncadd [#allocation4], 0
      %s87 = sshll.u32 [#allocation7], 4
      %s88 = int_to_ptr.vmem [resolvable:$true] %s87
      %s89 = sshll.u32 %s3, 4
      %s90 = int_to_ptr.hbm [resolvable:$true] %s89
      %92 = dma.vmem_to_hbm [thread:$0]  %s88, 128, %s90, [#allocation4]
    $region25: #{nestmlp_forward.1} parent=1 // pred_fallthru
      _
    // Predicated region
    $region26: #{nestmlp_forward.1} parent=1 // pred_check
      _
    $region27: #{nestmlp_forward.1} parent=1 // pred_check_branch
      %94 = sbr.rel (0) target = $region29
    $region28: #{nestmlp_forward.1} parent=1 // pred_region
      %96 = dma.done [#allocation4], 128
    $region29: #{nestmlp_forward.1} parent=1 // pred_fallthru
      _
    %97 = vsyncpa [#allocation3], 1
    %98 = vsyncpa [#allocation6], 1
    %99 = vsyncpa [#allocation4], 1

</llo_original>
